<compile_context>
chip_gen: v7x
topology: tpu7x:2x2x1
jax: 0.10.0
libtpu: 0.0.40
codegen_flags: <defaults>
</compile_context>

<pallas_src>
import functools

import jax
import jax.numpy as jnp
from jax.experimental import pallas as pl
from jax.experimental.pallas import tpu as pltpu


def _round_up(x, m):
    return (x + m - 1) // m * m


def _make_mlp_kernel(num_linear):
    """Build a fused transposed-MLP kernel for `num_linear` Linear layers."""

    def kernel(*refs):
        x_ref = refs[0]          # [n, bt]  features on sublanes, batch on lanes
        out_ref = refs[-1]       # [1, bt]  lane-dense output slab
        w_refs = refs[1:-1]      # alternating (W, b) refs

        h = x_ref[...]
        # Hidden layers: Linear + ReLU (+ Dropout == identity in eval mode).
        for li in range(num_linear - 1):
            w = w_refs[2 * li][...]        # [out, in]  (PyTorch layout, no transpose)
            b = w_refs[2 * li + 1][...]    # [out, 1]   broadcasts along the lane axis
            h = jnp.maximum(
                jnp.dot(w, h, preferred_element_type=jnp.float32) + b, 0.0)

        # Final Linear -> 1 output: VPU multiply + sublane (XLU) reduce instead of a
        # degenerate 1-row MXU matmul; result is already the lane-dense [1, bt] row.
        w_last = w_refs[-2][...]           # [d_last, 1]
        b_last = w_refs[-1][...]           # [1, 1]
        out_ref[...] = jnp.sum(h * w_last, axis=0, keepdims=True) + b_last

    return kernel


@functools.partial(jax.jit, static_argnames=("batch_tile", "vmem_budget_bytes"))
def num_mlp_forward(x, params, batch_tile=2048, vmem_budget_bytes=8 << 20):
    """x: [B, n] float32.  params: list of (W[out, in], b[out]) PyTorch-layout tensors."""
    B, n = x.shape
    num_linear = len(params)

    # Lane-aligned batch tile:
    #   - never tile past the (padded) batch itself,
    #   - keep the double-buffered x tile within the VMEM budget,
    #   - floor at one vreg width (128 lanes).
    bt_cap = max(128, (vmem_budget_bytes // (2 * n * 4)) // 128 * 128)
    bt = min(batch_tile, bt_cap, _round_up(B, 128))
    bt = max(128, _round_up(bt, 128))
    B_pad = _round_up(B, bt)

    # Transposed activations: [n, B_pad] with batch on the 128-lane axis.
    xT = jnp.pad(x, ((0, B_pad - B), (0, 0))).T

    # Tiny, one-time XLA-side preprocessing of weights/biases:
    #   hidden W stay [out, in]; biases -> columns [out, 1];
    #   final W [1, d_last] -> column [d_last, 1]; final bias -> [1, 1].
    flat = []
    for li, (w, b) in enumerate(params):
        if li < num_linear - 1:
            flat.append(w)
            flat.append(b.reshape(-1, 1))
        else:
            flat.append(w.reshape(-1, 1))
            flat.append(b.reshape(1, 1))

    grid = (B_pad // bt,)

    def const_spec(shape):
        # Whole-array block, constant block index -> stays resident across grid steps.
        return pl.BlockSpec(shape, lambda i: tuple(0 for _ in shape))

    in_specs = [pl.BlockSpec((n, bt), lambda i: (0, i))]
    for a in flat:
        in_specs.append(const_spec(a.shape))

    outT = pl.pallas_call(
        _make_mlp_kernel(num_linear),
        out_shape=jax.ShapeDtypeStruct((1, B_pad), jnp.float32),
        grid_spec=pltpu.PrefetchScalarGridSpec(
            num_scalar_prefetch=0,
            grid=grid,
            in_specs=in_specs,
            out_specs=pl.BlockSpec((1, bt), lambda i: (0, i)),
        ),
        compiler_params=pltpu.CompilerParams(
            dimension_semantics=("parallel",)),
    )(xT, *flat)

    # [1, B_pad] -> [B, 1]: drop padding columns, restore PyTorch output shape.
    return outT[:, :B].T


def init_linear(key, fan_in, fan_out):
    """Deterministic init mimicking PyTorch nn.Linear default (uniform +/- 1/sqrt(fan_in))."""
    kw, kb = jax.random.split(key)
    bound = 1.0 / (fan_in ** 0.5)
    w = jax.random.uniform(kw, (fan_out, fan_in), jnp.float32, -bound, bound)
    b = jax.random.uniform(kb, (fan_out,), jnp.float32, -bound, bound)
    return w, b


def reference_forward(x, params):
    h = x
    num_layers = len(params)
    for idx, (w, b) in enumerate(params):
        h = h @ w.T + b
        if idx < num_layers - 1:
            h = jnp.maximum(h, 0.0)   # ReLU; Dropout is identity in eval mode
    return h


if __name__ == "__main__":
    # Small shapes consistent with NumMLP(n=32, layers=[16, 0.5]) -> dims [32, 16, 16] -> 1.
    n = 32
    layer_dims = [n, 16, int(round(0.5 * n))]   # [32, 16, 16]
    B = 200                                     # non-multiple of 128 to exercise padding

    key = jax.random.PRNGKey(0)
    keys = jax.random.split(key, 1 + len(layer_dims))

    x = jax.random.normal(keys[0], (B, n), jnp.float32)

    params = []
    dims = layer_dims + [1]
    for li, (fi, fo) in enumerate(zip(dims[:-1], dims[1:])):
        params.append(init_linear(keys[1 + li], fi, fo))

    y = num_mlp_forward(x, params)
    y = jax.block_until_ready(y)

    y_ref = reference_forward(x, params)
    assert y.shape == (B, 1), y.shape
    assert jnp.allclose(y, y_ref, atol=1e-4, rtol=1e-4), (y, y_ref)

    print("KERNEL_OK")
</pallas_src>

<mosaic_0001>
module attributes {stable_mosaic.version = 11 : i64} {
  func.func @kernel(%arg0: i32, %arg1: memref<32x256xf32, #tpu.memory_space<vmem>>, %arg2: memref<16x32xf32, #tpu.memory_space<vmem>>, %arg3: memref<16x1xf32, #tpu.memory_space<vmem>>, %arg4: memref<16x16xf32, #tpu.memory_space<vmem>>, %arg5: memref<16x1xf32, #tpu.memory_space<vmem>>, %arg6: memref<16x1xf32, #tpu.memory_space<vmem>>, %arg7: memref<1x1xf32, #tpu.memory_space<vmem>>, %arg8: memref<1x256xf32, #tpu.memory_space<vmem>>) attributes {dimension_semantics = [#tpu.dimension_semantics<parallel>], iteration_bounds = array<i64: 1>, scalar_prefetch = 0 : i64, scratch_operands = 0 : i64, tpu.core_type = #tpu.core_type<tc>, window_params = [{transform_indices = @transform_0, window_bounds = array<i64: 32, 256>}, {pipeline_mode = #tpu.pipeline_mode<synchronous>, transform_indices = @transform_1, window_bounds = array<i64: 16, 32>}, {pipeline_mode = #tpu.pipeline_mode<synchronous>, transform_indices = @transform_2, window_bounds = array<i64: 16, 1>}, {pipeline_mode = #tpu.pipeline_mode<synchronous>, transform_indices = @transform_3, window_bounds = array<i64: 16, 16>}, {pipeline_mode = #tpu.pipeline_mode<synchronous>, transform_indices = @transform_4, window_bounds = array<i64: 16, 1>}, {pipeline_mode = #tpu.pipeline_mode<synchronous>, transform_indices = @transform_5, window_bounds = array<i64: 16, 1>}, {pipeline_mode = #tpu.pipeline_mode<synchronous>, transform_indices = @transform_6, window_bounds = array<i64: 1, 1>}, {transform_indices = @transform_7, window_bounds = array<i64: 1, 256>}]} {
    %c0 = arith.constant 0 : index
    %c0_0 = arith.constant 0 : index
    %0 = vector.load %arg1[%c0, %c0_0] : memref<32x256xf32, #tpu.memory_space<vmem>>, vector<32x256xf32>
    %c0_1 = arith.constant 0 : index
    %c0_2 = arith.constant 0 : index
    %1 = vector.load %arg2[%c0_1, %c0_2] : memref<16x32xf32, #tpu.memory_space<vmem>>, vector<16x32xf32>
    %c0_3 = arith.constant 0 : index
    %c0_4 = arith.constant 0 : index
    %2 = vector.load %arg3[%c0_3, %c0_4] : memref<16x1xf32, #tpu.memory_space<vmem>>, vector<16x1xf32>
    %cst = arith.constant dense<0.000000e+00> : vector<16x256xf32>
    %3 = tpu.matmul %1, %0, %cst {dimension_numbers = #tpu.dot_dimension_numbers<[1], [0], [0], [1], [0, 0, 1, 1], [], []>} : vector<16x32xf32>, vector<32x256xf32>, vector<16x256xf32> -> vector<16x256xf32>
    %4 = vector.broadcast %2 : vector<16x1xf32> to vector<16x256xf32>
    %5 = arith.addf %3, %4 : vector<16x256xf32>
    %cst_5 = arith.constant 0.000000e+00 : f32
    %6 = vector.broadcast %cst_5 : f32 to vector<16x256xf32>
    %7 = arith.maximumf %5, %6 : vector<16x256xf32>
    %c0_6 = arith.constant 0 : index
    %c0_7 = arith.constant 0 : index
    %8 = vector.load %arg4[%c0_6, %c0_7] : memref<16x16xf32, #tpu.memory_space<vmem>>, vector<16x16xf32>
    %c0_8 = arith.constant 0 : index
    %c0_9 = arith.constant 0 : index
    %9 = vector.load %arg5[%c0_8, %c0_9] : memref<16x1xf32, #tpu.memory_space<vmem>>, vector<16x1xf32>
    %cst_10 = arith.constant dense<0.000000e+00> : vector<16x256xf32>
    %10 = tpu.matmul %8, %7, %cst_10 {dimension_numbers = #tpu.dot_dimension_numbers<[1], [0], [0], [1], [0, 0, 1, 1], [], []>} : vector<16x16xf32>, vector<16x256xf32>, vector<16x256xf32> -> vector<16x256xf32>
    %11 = vector.broadcast %9 : vector<16x1xf32> to vector<16x256xf32>
    %12 = arith.addf %10, %11 : vector<16x256xf32>
    %cst_11 = arith.constant 0.000000e+00 : f32
    %13 = vector.broadcast %cst_11 : f32 to vector<16x256xf32>
    %14 = arith.maximumf %12, %13 : vector<16x256xf32>
    %c0_12 = arith.constant 0 : index
    %c0_13 = arith.constant 0 : index
    %15 = vector.load %arg6[%c0_12, %c0_13] : memref<16x1xf32, #tpu.memory_space<vmem>>, vector<16x1xf32>
    %c0_14 = arith.constant 0 : index
    %c0_15 = arith.constant 0 : index
    %16 = vector.load %arg7[%c0_14, %c0_15] : memref<1x1xf32, #tpu.memory_space<vmem>>, vector<1x1xf32>
    %17 = vector.broadcast %15 : vector<16x1xf32> to vector<16x256xf32>
    %18 = arith.mulf %14, %17 : vector<16x256xf32>
    %cst_16 = arith.constant dense<0.000000e+00> : vector<256xf32>
    %19 = vector.multi_reduction <add>, %18, %cst_16 [0] : vector<16x256xf32> to vector<256xf32>
    %20 = vector.shape_cast %19 : vector<256xf32> to vector<1x256xf32>
    %21 = vector.broadcast %16 : vector<1x1xf32> to vector<1x256xf32>
    %22 = arith.addf %20, %21 : vector<1x256xf32>
    %c0_17 = arith.constant 0 : index
    %c0_18 = arith.constant 0 : index
    %23 = vector.load %arg8[%c0_17, %c0_18] : memref<1x256xf32, #tpu.memory_space<vmem>>, vector<1x256xf32>
    tpu.vector_store %arg8[%c0_17, %c0_18], %22 {strides = array<i32>} : memref<1x256xf32, #tpu.memory_space<vmem>>, vector<1x256xf32>,
    return
  }
  func.func @transform_0(%arg0: i32) -> (i32, i32) {
    %c0_i32 = arith.constant 0 : i32
    %c0_i32_0 = arith.constant 0 : i32
    return %c0_i32, %arg0 : i32, i32
  }
  func.func @transform_1(%arg0: i32) -> (i32, i32) {
    %c0_i32 = arith.constant 0 : i32
    %c0_i32_0 = arith.constant 0 : i32
    %c0_i32_1 = arith.constant 0 : i32
    return %c0_i32, %c0_i32_0 : i32, i32
  }
  func.func @transform_2(%arg0: i32) -> (i32, i32) {
    %c0_i32 = arith.constant 0 : i32
    %c0_i32_0 = arith.constant 0 : i32
    %c0_i32_1 = arith.constant 0 : i32
    return %c0_i32, %c0_i32_0 : i32, i32
  }
  func.func @transform_3(%arg0: i32) -> (i32, i32) {
    %c0_i32 = arith.constant 0 : i32
    %c0_i32_0 = arith.constant 0 : i32
    %c0_i32_1 = arith.constant 0 : i32
    return %c0_i32, %c0_i32_0 : i32, i32
  }
  func.func @transform_4(%arg0: i32) -> (i32, i32) {
    %c0_i32 = arith.constant 0 : i32
    %c0_i32_0 = arith.constant 0 : i32
    %c0_i32_1 = arith.constant 0 : i32
    return %c0_i32, %c0_i32_0 : i32, i32
  }
  func.func @transform_5(%arg0: i32) -> (i32, i32) {
    %c0_i32 = arith.constant 0 : i32
    %c0_i32_0 = arith.constant 0 : i32
    %c0_i32_1 = arith.constant 0 : i32
    return %c0_i32, %c0_i32_0 : i32, i32
  }
  func.func @transform_6(%arg0: i32) -> (i32, i32) {
    %c0_i32 = arith.constant 0 : i32
    %c0_i32_0 = arith.constant 0 : i32
    %c0_i32_1 = arith.constant 0 : i32
    return %c0_i32, %c0_i32_0 : i32, i32
  }
  func.func @transform_7(%arg0: i32) -> (i32, i32) {
    %c0_i32 = arith.constant 0 : i32
    %c0_i32_0 = arith.constant 0 : i32
    return %c0_i32, %arg0 : i32, i32
  }
}

</mosaic_0001>

<llo_original>
// kernel: num_mlp_forward.1
$region0: #{num_mlp_forward.1}
  #allocation0 [shape = 'u32[]', space=smem, size = 0x4, offset = 0x4, fixed_abs, tag = 'smem constant byte address 0x4 - core index']
  #allocation1 [shape = 'u32[144,128]{1,0:T(1,128)}', space=vmem, size = 0x12000, scoped, tag = 'internal scratch']
  #allocation2 [shape = 'f32[1,1]{1,0:T(1,128)S(1)}', space=vmem, size = 0x200, scoped, tag = 'scoped memory for num_mlp_forward.1']
  %s0 = inlined_call_operand.vmem [shape: f32[32,256], index: 0, kind: input, shape index: {}]
  %s1 = inlined_call_operand.vmem [shape: f32[16,32], index: 1, kind: input, shape index: {}]
  %s2 = inlined_call_operand.vmem [shape: f32[16,1], index: 2, kind: input, shape index: {}]
  %s3 = inlined_call_operand.vmem [shape: f32[16,16], index: 3, kind: input, shape index: {}]
  %s4 = inlined_call_operand.vmem [shape: f32[16,1], index: 4, kind: input, shape index: {}]
  %s5 = inlined_call_operand.vmem [shape: f32[16,1], index: 5, kind: input, shape index: {}]
  %s6 = inlined_call_operand.<no memory space> [shape: f32[1,1], index: 6, kind: input, shape index: {}]
  %s7 = inlined_call_operand.vmem [shape: f32[1,256], index: 7, kind: output, shape index: {}]
  %s8 = sld [smem:[#allocation0]]
  $region38: #{num_mlp_forward.1} parent=0
    _
  %s10 = ssub.s32 1, %s8
  %s11 = scalar_select 0, %s10, %s8
  %v12 = vstv %s6
  %13 = vst [vmem:[#allocation2] sm:$0x1] %v12
  // Predicated region
  $region2: #{num_mlp_forward.1} parent=0 // pred_check
    _
  $region3: #{num_mlp_forward.1} parent=0 // pred_check_branch
    %15 = sbr.rel (0) target = $region5
  $region4: #{num_mlp_forward.1} parent=0 // pred_region
    _
  $region5: #{num_mlp_forward.1} parent=0 // pred_fallthru
    _
  // Predicated region
  $region6: #{num_mlp_forward.1} parent=0 // pred_check
    _
  $region7: #{num_mlp_forward.1} parent=0 // pred_check_branch
    %17 = sbr.rel (0) target = $region9
  $region8: #{num_mlp_forward.1} parent=0 // pred_region
    _
  $region9: #{num_mlp_forward.1} parent=0 // pred_fallthru
    _
  // Predicated region
  $region10: #{num_mlp_forward.1} parent=0 // pred_check
    _
  $region11: #{num_mlp_forward.1} parent=0 // pred_check_branch
    %19 = sbr.rel (0) target = $region13
  $region12: #{num_mlp_forward.1} parent=0 // pred_region
    _
  $region13: #{num_mlp_forward.1} parent=0 // pred_fallthru
    _
  // Predicated region
  $region14: #{num_mlp_forward.1} parent=0 // pred_check
    _
  $region15: #{num_mlp_forward.1} parent=0 // pred_check_branch
    %21 = sbr.rel (0) target = $region17
  $region16: #{num_mlp_forward.1} parent=0 // pred_region
    _
  $region17: #{num_mlp_forward.1} parent=0 // pred_fallthru
    _
  // Predicated region
  $region18: #{num_mlp_forward.1} parent=0 // pred_check
    _
  $region19: #{num_mlp_forward.1} parent=0 // pred_check_branch
    %23 = sbr.rel (0) target = $region21
  $region20: #{num_mlp_forward.1} parent=0 // pred_region
    _
  $region21: #{num_mlp_forward.1} parent=0 // pred_fallthru
    _
  // Predicated region
  $region22: #{num_mlp_forward.1} parent=0 // pred_check
    _
  $region23: #{num_mlp_forward.1} parent=0 // pred_check_branch
    %25 = sbr.rel (0) target = $region25
  $region24: #{num_mlp_forward.1} parent=0 // pred_region
    _
  $region25: #{num_mlp_forward.1} parent=0 // pred_fallthru
    _
  // Predicated region
  $region26: #{num_mlp_forward.1} parent=0 // pred_check
    _
  $region27: #{num_mlp_forward.1} parent=0 // pred_check_branch
    %27 = sbr.rel (0) target = $region29
  $region28: #{num_mlp_forward.1} parent=0 // pred_region
    _
  $region29: #{num_mlp_forward.1} parent=0 // pred_fallthru
    _
  %v28 = vld [vmem:[%s0] sm:$0xff]
  %v29 = vld [vmem:[%s0 + $0x8] sm:$0xff]
  %v30 = vld [vmem:[%s0 + $0x10] sm:$0xff]
  %v31 = vld [vmem:[%s0 + $0x18] sm:$0xff]
  %v32 = vld [vmem:[%s0 + $0x20] sm:$0xff]
  %v33 = vld [vmem:[%s0 + $0x28] sm:$0xff]
  %v34 = vld [vmem:[%s0 + $0x30] sm:$0xff]
  %v35 = vld [vmem:[%s0 + $0x38] sm:$0xff]
  %v36 = vld [vmem:[%s1] sm:$0xff]
  %v37 = vld [vmem:[%s1 + $0x8] sm:$0xff]
  %v38 = vld [vmem:[%s2] sm:$0xff]
  %v39 = vld [vmem:[%s2 + $0x8] sm:$0xff]
  %41 = vset.pattern.permute.xlu0 0
  %42 = vperm.xlu0 %41, %v38
  %v43 = vpop.permute.xlu0 %42
  %46 = vset.pattern.permute.xlu0 0
  %47 = vperm.xlu0 %46, %v39
  %v48 = vpop.permute.xlu0 %47
  %vm50 = vcmask 261120
  %v52 = vsel %vm50, %v36, 0
  %v55 = vsel %vm50, %v37, 0
  %57 = vmatprep.subr.mxu0 %v29
  %58 = vmatpush1.msra.mxu0 %v28
  %59 = vmatprep.subr.mxu0 %v31
  %60 = vmatpush1.msra.mxu0 %v30
  %61 = vmatprep.subr.mxu0 %v33
  %62 = vmatpush1.msra.mxu0 %v32
  %63 = vmatprep.subr.mxu0 %v35
  %64 = vmatpush1.msra.mxu0 %v34
  %65 = vmatprep.subr.mxu0 0.0
  %66 = vmatpush1.msra.mxu0 0.0
  %67 = vmatprep.subr.mxu0 0.0
  %68 = vmatpush1.msra.mxu0 0.0
  %69 = vmatprep.subr.mxu0 0.0
  %70 = vmatpush1.msra.mxu0 0.0
  %71 = vmatprep.subr.mxu0 0.0
  %72 = vmatpush1.msra.mxu0 0.0
  %73 = vmatprep.subr.mxu0 0.0
  %74 = vmatpush1.msra.mxu0 0.0
  %75 = vmatprep.subr.mxu0 0.0
  %76 = vmatpush1.msra.mxu0 0.0
  %77 = vmatprep.subr.mxu0 0.0
  %78 = vmatpush1.msra.mxu0 0.0
  %79 = vmatprep.subr.mxu0 0.0
  %80 = vmatpush1.msra.mxu0 0.0
  %81 = vmatprep.subr.mxu0 0.0
  %82 = vmatpush1.msra.mxu0 0.0
  %83 = vmatprep.subr.mxu0 0.0
  %84 = vmatpush1.msra.mxu0 0.0
  %85 = vmatprep.subr.mxu0 0.0
  %86 = vmatpush1.msra.mxu0 0.0
  %87 = vmatprep.subr.mxu0 0.0
  %88 = vmatpush1.msra.mxu0 0.0
  %89 = vmatprep.subr.mxu0 0.0
  %90 = vmatpush1.msra.mxu0 0.0
  %91 = vmatprep.subr.mxu0 0.0
  %92 = vmatpush1.msra.mxu0 0.0
  %93 = vmatprep.subr.mxu0 0.0
  %94 = vmatpush1.msra.mxu0 0.0
  %95 = vmatprep.subr.mxu0 0.0
  %96 = vmatpush1.msra.mxu0 0.0
  %97 = vmatprep.subr.mxu0 0.0
  %98 = vmatpush1.msra.mxu0 0.0
  %99 = vmatprep.subr.mxu0 0.0
  %100 = vmatpush1.msra.mxu0 0.0
  %101 = vmatprep.subr.mxu0 0.0
  %102 = vmatpush1.msra.mxu0 0.0
  %103 = vmatprep.subr.mxu0 0.0
  %104 = vmatpush1.msra.mxu0 0.0
  %105 = vmatprep.subr.mxu0 0.0
  %106 = vmatpush1.msra.mxu0 0.0
  %107 = vmatprep.subr.mxu0 0.0
  %108 = vmatpush1.msra.mxu0 0.0
  %109 = vmatprep.subr.mxu0 0.0
  %110 = vmatpush1.msra.mxu0 0.0
  %111 = vmatprep.subr.mxu0 0.0
  %112 = vmatpush1.msra.mxu0 0.0
  %113 = vmatprep.subr.mxu0 0.0
  %114 = vmatpush1.msra.mxu0 0.0
  %115 = vmatprep.subr.mxu0 0.0
  %116 = vmatpush1.msra.mxu0 0.0
  %117 = vmatprep.subr.mxu0 0.0
  %118 = vmatpush1.msra.mxu0 0.0
  %119 = vmatprep.subr.mxu0 0.0
  %120 = vmatpush1.msra.mxu0 0.0
  %121 = vmatprep.mubr.f32.mxu0 0.0
  %122 = vmatmul.mubr.f32.gmra.mrb[0].mxu0 %v52
  %v123 = vpop.f32.mrb[0].mxu0
  %v124 = vadd.f32 %v43, %v123
  %v125 = vpop.f32.mrb[0].mxu0
  %v126 = vadd.f32 %v43, %v125
  %127 = vmatprep.mubr.f32.mxu0 0.0
  %128 = vmatmul.mubr.f32.gmra.mrb[0].mxu0 %v55
  %v129 = vpop.f32.mrb[0].mxu0
  %v130 = vadd.f32 %v48, %v129
  %v131 = vpop.f32.mrb[0].mxu0
  %v132 = vadd.f32 %v48, %v131
  %133 = vdwg.mxu0
  %v134 = vmax.f32 %v124, 0.0
  %v135 = vmax.f32 %v126, 0.0
  %v136 = vmax.f32 %v130, 0.0
  %v137 = vmax.f32 %v132, 0.0
  %v138 = vld [vmem:[%s3] sm:$0xff]
  %v139 = vld [vmem:[%s3 + $0x8] sm:$0xff]
  %v140 = vld [vmem:[%s4] sm:$0xff]
  %v141 = vld [vmem:[%s4 + $0x8] sm:$0xff]
  %143 = vset.pattern.permute.xlu0 0
  %144 = vperm.xlu0 %143, %v140
  %v145 = vpop.permute.xlu0 %144
  %148 = vset.pattern.permute.xlu0 0
  %149 = vperm.xlu0 %148, %v141
  %v150 = vpop.permute.xlu0 %149
  %vm152 = vcmask 130048
  %v154 = vsel %vm152, %v138, 0
  %v157 = vsel %vm152, %v139, 0
  %159 = vmatprep.subr.mxu0 %v135
  %160 = vmatpush1.msra.mxu0 %v134
  %161 = vmatprep.subr.mxu0 %v137
  %162 = vmatpush1.msra.mxu0 %v136
  %163 = vmatprep.subr.mxu0 0.0
  %164 = vmatpush1.msra.mxu0 0.0
  %165 = vmatprep.subr.mxu0 0.0
  %166 = vmatpush1.msra.mxu0 0.0
  %167 = vmatprep.subr.mxu0 0.0
  %168 = vmatpush1.msra.mxu0 0.0
  %169 = vmatprep.subr.mxu0 0.0
  %170 = vmatpush1.msra.mxu0 0.0
  %171 = vmatprep.subr.mxu0 0.0
  %172 = vmatpush1.msra.mxu0 0.0
  %173 = vmatprep.subr.mxu0 0.0
  %174 = vmatpush1.msra.mxu0 0.0
  %175 = vmatprep.subr.mxu0 0.0
  %176 = vmatpush1.msra.mxu0 0.0
  %177 = vmatprep.subr.mxu0 0.0
  %178 = vmatpush1.msra.mxu0 0.0
  %179 = vmatprep.subr.mxu0 0.0
  %180 = vmatpush1.msra.mxu0 0.0
  %181 = vmatprep.subr.mxu0 0.0
  %182 = vmatpush1.msra.mxu0 0.0
  %183 = vmatprep.subr.mxu0 0.0
  %184 = vmatpush1.msra.mxu0 0.0
  %185 = vmatprep.subr.mxu0 0.0
  %186 = vmatpush1.msra.mxu0 0.0
  %187 = vmatprep.subr.mxu0 0.0
  %188 = vmatpush1.msra.mxu0 0.0
  %189 = vmatprep.subr.mxu0 0.0
  %190 = vmatpush1.msra.mxu0 0.0
  %191 = vmatprep.subr.mxu0 0.0
  %192 = vmatpush1.msra.mxu0 0.0
  %193 = vmatprep.subr.mxu0 0.0
  %194 = vmatpush1.msra.mxu0 0.0
  %195 = vmatprep.subr.mxu0 0.0
  %196 = vmatpush1.msra.mxu0 0.0
  %197 = vmatprep.subr.mxu0 0.0
  %198 = vmatpush1.msra.mxu0 0.0
  %199 = vmatprep.subr.mxu0 0.0
  %200 = vmatpush1.msra.mxu0 0.0
  %201 = vmatprep.subr.mxu0 0.0
  %202 = vmatpush1.msra.mxu0 0.0
  %203 = vmatprep.subr.mxu0 0.0
  %204 = vmatpush1.msra.mxu0 0.0
  %205 = vmatprep.subr.mxu0 0.0
  %206 = vmatpush1.msra.mxu0 0.0
  %207 = vmatprep.subr.mxu0 0.0
  %208 = vmatpush1.msra.mxu0 0.0
  %209 = vmatprep.subr.mxu0 0.0
  %210 = vmatpush1.msra.mxu0 0.0
  %211 = vmatprep.subr.mxu0 0.0
  %212 = vmatpush1.msra.mxu0 0.0
  %213 = vmatprep.subr.mxu0 0.0
  %214 = vmatpush1.msra.mxu0 0.0
  %215 = vmatprep.subr.mxu0 0.0
  %216 = vmatpush1.msra.mxu0 0.0
  %217 = vmatprep.subr.mxu0 0.0
  %218 = vmatpush1.msra.mxu0 0.0
  %219 = vmatprep.subr.mxu0 0.0
  %220 = vmatpush1.msra.mxu0 0.0
  %221 = vmatprep.subr.mxu0 0.0
  %222 = vmatpush1.msra.mxu0 0.0
  %223 = vmatprep.mubr.f32.mxu0 0.0
  %224 = vmatmul.mubr.f32.gmra.mrb[0].mxu0 %v154
  %v225 = vpop.f32.mrb[0].mxu0
  %v226 = vadd.f32 %v145, %v225
  %v227 = vpop.f32.mrb[0].mxu0
  %v228 = vadd.f32 %v145, %v227
  %229 = vmatprep.mubr.f32.mxu0 0.0
  %230 = vmatmul.mubr.f32.gmra.mrb[0].mxu0 %v157
  %v231 = vpop.f32.mrb[0].mxu0
  %v232 = vadd.f32 %v150, %v231
  %v233 = vpop.f32.mrb[0].mxu0
  %v234 = vadd.f32 %v150, %v233
  %235 = vdwg.mxu0
  %v236 = vmax.f32 %v226, 0.0
  %v237 = vmax.f32 %v228, 0.0
  %v238 = vmax.f32 %v232, 0.0
  %v239 = vmax.f32 %v234, 0.0
  %v240 = vld [vmem:[%s5] sm:$0xff]
  %v241 = vld [vmem:[%s5 + $0x8] sm:$0xff]
  %v242 = vld [vmem:[#allocation2] sm:$0x1]
  %244 = vset.pattern.permute.xlu0 0
  %245 = vperm.xlu0 %244, %v240
  %v246 = vpop.permute.xlu0 %245
  %249 = vset.pattern.permute.xlu0 0
  %250 = vperm.xlu0 %249, %v241
  %v251 = vpop.permute.xlu0 %250
  %v253 = vmul.f32 %v236, %v246
  %v254 = vmul.f32 %v237, %v246
  %v255 = vmul.f32 %v238, %v251
  %v256 = vmul.f32 %v239, %v251
  %v257 = vadd.f32 %v253, %v255
  %v258 = vrot.slane %v257, 4
  %v259 = vadd.f32 %v257, %v258
  %v260 = vrot.slane %v259, 2
  %v261 = vadd.f32 %v259, %v260
  %v262 = vrot.slane %v261, 1
  %v263 = vadd.f32 %v261, %v262
  %v264 = vadd.f32 %v254, %v256
  %v265 = vrot.slane %v264, 4
  %v266 = vadd.f32 %v264, %v265
  %v267 = vrot.slane %v266, 2
  %v268 = vadd.f32 %v266, %v267
  %v269 = vrot.slane %v268, 1
  %v270 = vadd.f32 %v268, %v269
  %272 = vset.pattern.permute.xlu0 0
  %273 = vperm.xlu0 %272, %v242
  %v274 = vpop.permute.xlu0 %273
  %v276 = vlaneseq
  %v277 = vshrl.u32 %v276, 7
  %v278 = vsub.s32 0, %v277
  %v279 = vrot.slane %v274, %v278
  %v280 = vadd.f32 %v263, %v279
  %v281 = vadd.f32 %v270, %v279
  %v284 = vcombine.low %v280, %v281
  %v286 = vunpack.c.l.s4 1966171168
  %v287 = vunpack.c.0.s8 %v286
  %v288 = vlaneseq
  %v289 = vshrl.u32 %v288, 7
  %v290 = vsub.s32 %v287, %v289
  %v291 = vrot.slane %v284, %v290
  %v293 = vunpack.c.l.s4 1966171168
  %v294 = vunpack.c.0.s8 %v293
  %v295 = vlaneseq
  %v296 = vshrl.u32 %v295, 7
  %v297 = vsub.s32 %v294, %v296
  %v298 = vrot.slane %v291, %v297
  %v300 = vlaneseq
  %vm301 = vcmp.ge.s32.totalorder %v300, 0
  %vm302 = vcmp.lt.s32.totalorder %v300, 256
  %vm303 = vmand %vm301, %vm302
  %304 = vst.msk [vmem:[%s7] sm:$0x3] %vm303, %v298
  // Predicated region
  $region30: #{num_mlp_forward.1} parent=0 // pred_check
    _
  $region31: #{num_mlp_forward.1} parent=0 // pred_check_branch
    %306 = sbr.rel (0) target = $region33
  $region32: #{num_mlp_forward.1} parent=0 // pred_region
    _
  $region33: #{num_mlp_forward.1} parent=0 // pred_fallthru
    _
  // Predicated region
  $region34: #{num_mlp_forward.1} parent=0 // pred_check
    _
  $region35: #{num_mlp_forward.1} parent=0 // pred_check_branch
    %308 = sbr.rel (0) target = $region37
  $region36: #{num_mlp_forward.1} parent=0 // pred_region
    _
  $region37: #{num_mlp_forward.1} parent=0 // pred_fallthru
    _

</llo_original>
